<compile_context>
chip_gen: v7x
topology: tpu7x:2x2x1
jax: 0.10.0
libtpu: 0.0.40
codegen_flags: <defaults>
</compile_context>

<pallas_src>
import functools

import jax
import jax.numpy as jnp
from jax.experimental import pallas as pl
from jax.experimental.pallas import tpu as pltpu

_LANE = 128
_SUBLANE = 8


def _copy_kernel(x_ref, o_ref):
    # Straight VMEM tile pass-through.
    o_ref[...] = x_ref[...]


def feature_returner(x: jax.Array) -> jax.Array:
    """FeatureReturner.forward == identity. The optimal kernel is no kernel."""
    return x


@jax.jit
def feature_returner_materialized(x: jax.Array) -> jax.Array:
    """Identity that materializes a fresh buffer via a lane-dense Pallas copy."""
    total = x.size
    itemsize = jnp.dtype(x.dtype).itemsize
    cost = pl.CostEstimate(
        flops=0, transcendentals=0, bytes_accessed=2 * total * itemsize
    )

    # Pick the widest last dim (multiple of 128, capped at 4096 elems) that
    # divides the element count and leaves a sublane-multiple row count.
    cols = None
    for c in (4096, 2048, 1024, 512, 256, 128):
        if total % c == 0 and (total // c) % _SUBLANE == 0:
            cols = c
            break

    if cols is None:
        # TODO(synk): element counts not divisible by 1024 fall back to a single
        # whole-array block (fine for small feature maps); very large irregular
        # shapes would want a pad-and-slice wrapper instead.
        return pl.pallas_call(
            _copy_kernel,
            out_shape=jax.ShapeDtypeStruct(x.shape, x.dtype),
            in_specs=[pl.BlockSpec(memory_space=pltpu.MemorySpace.VMEM)],
            out_specs=pl.BlockSpec(memory_space=pltpu.MemorySpace.VMEM),
            input_output_aliases={0: 0},
            cost_estimate=cost,
        )(x)

    rows = total // cols
    x2 = x.reshape(rows, cols)

    # Target ~4 MiB blocks (safe for v7x's 64 MiB VMEM with double buffering,
    # large enough to reach ~85%+ of HBM roofline on v5e/v6e/v7x).
    target_block_bytes = 4 * 1024 * 1024
    computed_rows = (target_block_bytes // (cols * itemsize)) // _SUBLANE * _SUBLANE
    rows_per_block = min(rows, max(_SUBLANE, computed_rows))
    grid = (pl.cdiv(rows, rows_per_block),)

    block_bytes = rows_per_block * cols * itemsize
    # Room for double-buffered input + output, with headroom, capped under 64 MiB.
    vmem_limit = int(
        min(48 * 1024 * 1024, max(16 * 1024 * 1024, 4 * block_bytes + (2 << 20)))
    )

    y2 = pl.pallas_call(
        _copy_kernel,
        out_shape=jax.ShapeDtypeStruct((rows, cols), x.dtype),
        grid=grid,
        in_specs=[pl.BlockSpec((rows_per_block, cols), lambda i: (i, 0))],
        out_specs=pl.BlockSpec((rows_per_block, cols), lambda i: (i, 0)),
        input_output_aliases={0: 0},
        compiler_params=pltpu.CompilerParams(
            dimension_semantics=("parallel",),
            vmem_limit_bytes=vmem_limit,
        ),
        cost_estimate=cost,
    )(x2)
    return y2.reshape(x.shape)


if __name__ == "__main__":
    key = jax.random.PRNGKey(0)
    x = jax.random.normal(key, (2, 4, 16, 16), dtype=jnp.float32)

    # Optimal path: pure identity, zero HBM traffic.
    y_fast = feature_returner(x)

    # Materialized path: runs the Pallas copy kernel once.
    y = feature_returner_materialized(x)
    jax.block_until_ready(y)

    assert y_fast.shape == x.shape and y_fast.dtype == x.dtype
    assert y.shape == x.shape and y.dtype == x.dtype
    assert bool(jnp.array_equal(y_fast, x))
    assert bool(jnp.array_equal(y, x))
    print("KERNEL_OK")
</pallas_src>

<mosaic_0001>
module attributes {stable_mosaic.version = 11 : i64} {
  func.func @_copy_kernel(%arg0: i32, %arg1: memref<8x256xf32, #tpu.memory_space<vmem>>, %arg2: memref<8x256xf32, #tpu.memory_space<vmem>>) attributes {dimension_semantics = [#tpu.dimension_semantics<parallel>], iteration_bounds = array<i64: 1>, scalar_prefetch = 0 : i64, scratch_operands = 0 : i64, tpu.core_type = #tpu.core_type<tc>, window_params = [{transform_indices = @transform_0, window_bounds = array<i64: 8, 256>}, {transform_indices = @transform_1, window_bounds = array<i64: 8, 256>}]} {
    %c0 = arith.constant 0 : index
    %c0_0 = arith.constant 0 : index
    %0 = vector.load %arg1[%c0, %c0_0] : memref<8x256xf32, #tpu.memory_space<vmem>>, vector<8x256xf32>
    %c0_1 = arith.constant 0 : index
    %c0_2 = arith.constant 0 : index
    %1 = vector.load %arg2[%c0_1, %c0_2] : memref<8x256xf32, #tpu.memory_space<vmem>>, vector<8x256xf32>
    tpu.vector_store %arg2[%c0_1, %c0_2], %0 {strides = array<i32>} : memref<8x256xf32, #tpu.memory_space<vmem>>, vector<8x256xf32>,
    return
  }
  func.func @transform_0(%arg0: i32) -> (i32, i32) {
    %c0_i32 = arith.constant 0 : i32
    %c0_i32_0 = arith.constant 0 : i32
    return %arg0, %c0_i32 : i32, i32
  }
  func.func @transform_1(%arg0: i32) -> (i32, i32) {
    %c0_i32 = arith.constant 0 : i32
    %c0_i32_0 = arith.constant 0 : i32
    return %arg0, %c0_i32 : i32, i32
  }
}

</mosaic_0001>

<llo_original>
// kernel: feature_returner_materialized.1
$region0: #{feature_returner_materialized.1}
  #allocation0 [shape = 'u32[]', space=smem, size = 0x4, offset = 0x4, fixed_abs, tag = 'smem constant byte address 0x4 - core index']
  #allocation1 [shape = 'u32[144,128]{1,0:T(1,128)}', space=vmem, size = 0x12000, scoped, tag = 'internal scratch']
  %s0 = inlined_call_operand.vmem [shape: f32[8,256], index: 0, kind: input, shape index: {}, may-alias: {0,1}]
  %s1 = inlined_call_operand.vmem [shape: f32[8,256], index: 1, kind: output, shape index: {}, may-alias: {0,1}]
  %s2 = sld [smem:[#allocation0]]
  $region14: #{feature_returner_materialized.1} parent=0
    _
  %s4 = ssub.s32 1, %s2
  %s5 = scalar_select 0, %s4, %s2
  // Predicated region
  $region2: #{feature_returner_materialized.1} parent=0 // pred_check
    _
  $region3: #{feature_returner_materialized.1} parent=0 // pred_check_branch
    %7 = sbr.rel (0) target = $region5
  $region4: #{feature_returner_materialized.1} parent=0 // pred_region
    _
  $region5: #{feature_returner_materialized.1} parent=0 // pred_fallthru
    _
  %v8 = vld [vmem:[%s0] sm:$0xff]
  %v9 = vld [vmem:[%s0 + $0x8] sm:$0xff]
  %10 = vst [vmem:[%s1] sm:$0xff] %v8
  %11 = vst [vmem:[%s1 + $0x8] sm:$0xff] %v9
  // Predicated region
  $region6: #{feature_returner_materialized.1} parent=0 // pred_check
    _
  $region7: #{feature_returner_materialized.1} parent=0 // pred_check_branch
    %13 = sbr.rel (0) target = $region9
  $region8: #{feature_returner_materialized.1} parent=0 // pred_region
    _
  $region9: #{feature_returner_materialized.1} parent=0 // pred_fallthru
    _
  // Predicated region
  $region10: #{feature_returner_materialized.1} parent=0 // pred_check
    _
  $region11: #{feature_returner_materialized.1} parent=0 // pred_check_branch
    %15 = sbr.rel (0) target = $region13
  $region12: #{feature_returner_materialized.1} parent=0 // pred_region
    _
  $region13: #{feature_returner_materialized.1} parent=0 // pred_fallthru
    _

</llo_original>
